<compile_context>
chip_gen: v5e
topology: v5e:2x2
jax: 0.10.0
libtpu: 0.0.40
codegen_flags: <defaults>
</compile_context>

<pallas_src>
import functools
import math

import jax
import jax.numpy as jnp
from jax.experimental import pallas as pl
from jax.experimental.pallas import tpu as pltpu


_LANE = 128
_VMEM_LIMIT = 48 * 1024 * 1024     # scoped VMEM request; safe on v7x (64 MiB phys)
_TILE_BUDGET = 28 * 1024 * 1024    # double-buffered working-set budget per call
_FUSE_BUDGET = 36 * 1024 * 1024    # resident-weight budget for whole-MLP fusion


# ---------------------------------------------------------------------------
# Small helpers
# ---------------------------------------------------------------------------
def _round_up(n, m):
    return -(-n // m) * m


def _sublane_min(dtype):
    # Minimum second-minor tile: 8 rows f32, 16 bf16, 32 int8/fp8.
    return {4: 8, 2: 16, 1: 32}.get(jnp.dtype(dtype).itemsize, 8)


def _pick_tm(m, sub):
    mp = _round_up(m, sub)
    for cand in (512, 256, 128, 64, 32, 16, 8):
        if cand % sub == 0 and cand <= mp:
            return cand
    return mp


def _pad2(a, rows, cols):
    r, c = a.shape
    if (r, c) == (rows, cols):
        return a
    return jnp.pad(a, ((0, rows - r), (0, cols - c)))


# ---------------------------------------------------------------------------
# Per-layer fused Linear (+bias+activation) kernels
# ---------------------------------------------------------------------------
def _linear_kernel_single(x_ref, w_ref, b_ref, o_ref, *, activation):
    """Single K pass: no scratch accumulator, direct lane-dense store."""
    y = jnp.dot(x_ref[...], w_ref[...], preferred_element_type=jnp.float32)
    y = y + b_ref[...].astype(jnp.float32)
    if activation is not None:
        y = activation(y)
    o_ref[...] = y.astype(o_ref.dtype)


def _linear_kernel_acc(x_ref, w_ref, b_ref, o_ref, acc_ref, *, activation):
    """Multi K pass: f32 VMEM accumulator, first pass initializes (no zero-fill)."""
    k = pl.program_id(2)
    part = jnp.dot(x_ref[...], w_ref[...], preferred_element_type=jnp.float32)

    @pl.when(k == 0)
    def _():
        acc_ref[...] = part

    @pl.when(k != 0)
    def _():
        acc_ref[...] += part

    @pl.when(k == pl.num_programs(2) - 1)
    def _():
        y = acc_ref[...] + b_ref[...].astype(jnp.float32)
        if activation is not None:
            y = activation(y)
        o_ref[...] = y.astype(o_ref.dtype)


def linear_pallas(x, w, b, activation=None, mxu_dtype=None):
    """y = activation(x @ w + b) as a single fused Pallas call.

    x: [M, K], w: [K, N] (input-major), b: [N].  Returns [M, N] in x.dtype.
    mxu_dtype: optional reduced-precision MXU input dtype (e.g. jnp.bfloat16);
      accumulation stays f32.
    """
    M, K = x.shape
    Kw, N = w.shape
    assert K == Kw, (K, Kw)
    assert b.shape == (N,), b.shape

    out_dtype = x.dtype
    in_dtype = jnp.dtype(mxu_dtype) if mxu_dtype is not None else jnp.dtype(x.dtype)
    isz_in = in_dtype.itemsize
    isz_out = jnp.dtype(out_dtype).itemsize

    # --- tile selection (256/512-aligned, dtype-aware sublane minimum) ---
    sub = _sublane_min(in_dtype)
    tm = _pick_tm(M, sub)
    Mp = _round_up(M, tm)

    Kp = _round_up(K, _LANE)
    if Kp <= 2048:
        tk = Kp                       # single reduction pass
    else:
        tk = 1024
        Kp = _round_up(K, tk)
    nk = Kp // tk

    Np = _round_up(N, _LANE)

    def working_set(tn):
        s = 2 * (tm * tk + tk * tn) * isz_in + 2 * tm * tn * isz_out
        if nk > 1:
            s += tm * tn * 4          # f32 accumulator
        return s

    # Prefer the whole (padded) output width resident so x streams once.
    if working_set(Np) <= _TILE_BUDGET:
        tn = Np
    else:
        tn = 128
        for cand in (512, 256):
            if working_set(cand) <= _TILE_BUDGET:
                tn = cand
                break
        Np = _round_up(N, tn)

    # --- zero-pad operands (inert for matmul; sliced off at the end) ---
    xp = _pad2(x.astype(in_dtype), Mp, Kp)
    wp = _pad2(w.astype(in_dtype), Kp, Np)
    bp = _pad2(b.reshape(1, -1), 1, Np)

    cost = pl.CostEstimate(
        flops=2 * M * N * K,
        transcendentals=(M * N if activation is not None else 0),
        bytes_accessed=(Mp * Kp + Kp * Np) * isz_in + (Mp * Np + Np) * isz_out,
    )
    cparams_kw = dict(vmem_limit_bytes=_VMEM_LIMIT)

    if nk == 1:
        kernel = functools.partial(_linear_kernel_single, activation=activation)
        out = pl.pallas_call(
            kernel,
            out_shape=jax.ShapeDtypeStruct((Mp, Np), out_dtype),
            grid_spec=pltpu.PrefetchScalarGridSpec(
                num_scalar_prefetch=0,
                grid=(Mp // tm, Np // tn),
                in_specs=[
                    pl.BlockSpec((tm, tk), lambda i, j: (i, 0)),
                    pl.BlockSpec((tk, tn), lambda i, j: (0, j)),
                    pl.BlockSpec((1, tn), lambda i, j: (0, j)),
                ],
                out_specs=pl.BlockSpec((tm, tn), lambda i, j: (i, j)),
            ),
            compiler_params=pltpu.CompilerParams(
                dimension_semantics=("parallel", "parallel"), **cparams_kw),
            cost_estimate=cost,
        )(xp, wp, bp)
    else:
        kernel = functools.partial(_linear_kernel_acc, activation=activation)
        out = pl.pallas_call(
            kernel,
            out_shape=jax.ShapeDtypeStruct((Mp, Np), out_dtype),
            grid_spec=pltpu.PrefetchScalarGridSpec(
                num_scalar_prefetch=0,
                grid=(Mp // tm, Np // tn, nk),
                in_specs=[
                    pl.BlockSpec((tm, tk), lambda i, j, k: (i, k)),
                    pl.BlockSpec((tk, tn), lambda i, j, k: (k, j)),
                    pl.BlockSpec((1, tn), lambda i, j, k: (0, j)),
                ],
                out_specs=pl.BlockSpec((tm, tn), lambda i, j, k: (i, j)),
                scratch_shapes=[pltpu.VMEM((tm, tn), jnp.float32)],
            ),
            compiler_params=pltpu.CompilerParams(
                dimension_semantics=("parallel", "parallel", "arbitrary"),
                **cparams_kw),
            cost_estimate=cost,
        )(xp, wp, bp)

    return out[:M, :N]


# ---------------------------------------------------------------------------
# Whole-MLP fused kernel (weights VMEM-resident, grid over M only)
# ---------------------------------------------------------------------------
def _mlp_fused_kernel(*refs, num_layers, inner_activation, outer_activation):
    x_ref = refs[0]
    o_ref = refs[1 + 2 * num_layers]
    h = x_ref[...]
    for l in range(num_layers):
        w_ref = refs[1 + 2 * l]
        b_ref = refs[2 + 2 * l]
        h = jnp.dot(h.astype(w_ref.dtype), w_ref[...],
                    preferred_element_type=jnp.float32)
        h = h + b_ref[...].astype(jnp.float32)
        act = outer_activation if l == num_layers - 1 else inner_activation
        if act is not None:
            h = act(h)
        # TODO(synk): training-mode Dropout(p>0) would apply here; the module
        # default (p=0.0 / eval) is the identity, which is what we implement.
    o_ref[...] = h.astype(o_ref.dtype)


def _mlp_fused(h, params, inner_activation, outer_activation, mxu_dtype):
    M, D0 = h.shape
    out_dtype = h.dtype
    in_dtype = jnp.dtype(mxu_dtype) if mxu_dtype is not None else jnp.dtype(h.dtype)

    sub = _sublane_min(in_dtype)
    tm = _pick_tm(M, sub)
    Mp = _round_up(M, tm)
    D0p = _round_up(D0, _LANE)

    args = [_pad2(h.astype(in_dtype), Mp, D0p)]
    in_specs = [pl.BlockSpec((tm, D0p), lambda i: (i, 0))]
    for w, b in params:
        din, dout = w.shape
        dinp, doutp = _round_up(din, _LANE), _round_up(dout, _LANE)
        wdt = mxu_dtype if mxu_dtype is not None else w.dtype
        args.append(_pad2(w.astype(wdt), dinp, doutp))
        args.append(_pad2(b.reshape(1, -1), 1, doutp))
        in_specs.append(pl.BlockSpec((dinp, doutp), lambda i: (0, 0)))
        in_specs.append(pl.BlockSpec((1, doutp), lambda i: (0, 0)))

    N_last = params[-1][0].shape[1]
    NLp = _round_up(N_last, _LANE)   # lane-dense output even for small out_size

    kernel = functools.partial(
        _mlp_fused_kernel, num_layers=len(params),
        inner_activation=inner_activation, outer_activation=outer_activation)

    out = pl.pallas_call(
        kernel,
        out_shape=jax.ShapeDtypeStruct((Mp, NLp), out_dtype),
        grid_spec=pltpu.PrefetchScalarGridSpec(
            num_scalar_prefetch=0,
            grid=(Mp // tm,),
            in_specs=in_specs,
            out_specs=pl.BlockSpec((tm, NLp), lambda i: (i, 0)),
        ),
        compiler_params=pltpu.CompilerParams(
            dimension_semantics=("parallel",),
            vmem_limit_bytes=_VMEM_LIMIT),
    )(*args)
    return out[:M, :N_last]


def _fusion_fits(h, params, mxu_dtype):
    in_dtype = jnp.dtype(mxu_dtype) if mxu_dtype is not None else jnp.dtype(h.dtype)
    isz_w = in_dtype.itemsize
    sub = _sublane_min(in_dtype)
    tm = _pick_tm(h.shape[0], sub)
    d0p = _round_up(h.shape[1], _LANE)
    weight_bytes = 0
    dmax = d0p
    for w, _ in params:
        dinp = _round_up(w.shape[0], _LANE)
        doutp = _round_up(w.shape[1], _LANE)
        weight_bytes += dinp * doutp * isz_w + doutp * 4
        dmax = max(dmax, doutp)
    io_bytes = (2 * tm * d0p * in_dtype.itemsize
                + 2 * tm * _round_up(params[-1][0].shape[1], _LANE)
                * jnp.dtype(h.dtype).itemsize)
    hidden_bytes = 2 * tm * dmax * 4
    # 2x on weights: conservatively budget Pallas' double-buffer allocation.
    return 2 * weight_bytes + io_bytes + hidden_bytes <= _FUSE_BUDGET


# ---------------------------------------------------------------------------
# MLP module equivalent
# ---------------------------------------------------------------------------
def init_mlp_params(key, num_of_layers, init_size, out_size, dtype=jnp.float32):
    """PyTorch-style Linear init: U(-1/sqrt(fan_in), 1/sqrt(fan_in)).
    Weights stored input-major [in, out] so the kernel matmul is x @ w."""
    if num_of_layers <= 0:
        return []
    sizes = [(init_size, init_size)] * (num_of_layers - 1) + [(init_size, out_size)]
    params = []
    for fan_in, fan_out in sizes:
        key, kw, kb = jax.random.split(key, 3)
        bound = 1.0 / math.sqrt(fan_in)
        w = jax.random.uniform(kw, (fan_in, fan_out), dtype, -bound, bound)
        bvec = jax.random.uniform(kb, (fan_out,), dtype, -bound, bound)
        params.append((w, bvec))
    return params


def mlp_forward(x, params, inner_activation=None, outer_activation=None,
                mxu_dtype=None):
    """Equivalent of MLP.forward (inference: Dropout(p=0.0) is identity).

    x: [..., init_size] -> [..., out_size]
    mxu_dtype: optional bf16 MXU path (f32 accumulation); default exact-dtype.
    """
    if not params:
        return x
    lead = x.shape[:-1]
    h = x.reshape(-1, x.shape[-1])
    out_size = params[-1][0].shape[1]

    if _fusion_fits(h, params, mxu_dtype):
        out = _mlp_fused(h, params, inner_activation, outer_activation, mxu_dtype)
    else:
        n = len(params)
        for idx, (w, b) in enumerate(params):
            act = outer_activation if idx == n - 1 else inner_activation
            h = linear_pallas(h, w, b, activation=act, mxu_dtype=mxu_dtype)
        out = h
    return out.reshape(lead + (out_size,))


# ---------------------------------------------------------------------------
# Test
# ---------------------------------------------------------------------------
if __name__ == "__main__":
    key = jax.random.PRNGKey(0)

    # --- main MLP test (fused path): B=2, S=8, 3 layers, 128 -> 64 ----------
    B, S = 2, 8
    num_of_layers, init_size, out_size = 3, 128, 64
    kx, kp, k2, k3, k4 = jax.random.split(key, 5)
    x = jax.random.normal(kx, (B, S, init_size), dtype=jnp.float32)
    params = init_mlp_params(kp, num_of_layers, init_size, out_size)

    inner_act = jnp.tanh
    outer_act = None

    out = mlp_forward(x, params, inner_activation=inner_act,
                      outer_activation=outer_act)
    out = jax.block_until_ready(out)

    def ref_mlp(xin):
        h = xin
        n = len(params)
        for idx, (w, b) in enumerate(params):
            h = jnp.dot(h, w, precision=jax.lax.Precision.HIGHEST) + b
            act = outer_act if idx == n - 1 else inner_act
            if act is not None:
                h = act(h)
        return h

    ref = ref_mlp(x)
    assert out.shape == (B, S, out_size), out.shape
    assert out.dtype == x.dtype, out.dtype
    assert jnp.allclose(out, ref, atol=1e-3, rtol=1e-3), \
        float(jnp.max(jnp.abs(out - ref)))

    # --- padding test (non-128/8-aligned dims through the fused path) -------
    xb = jax.random.normal(k2, (10, 96), dtype=jnp.float32)
    params_b = init_mlp_params(k3, 2, 96, 40)
    out_b = jax.block_until_ready(
        mlp_forward(xb, params_b, inner_activation=jnp.tanh))
    hb = jnp.tanh(xb @ params_b[0][0] + params_b[0][1])
    ref_b = hb @ params_b[1][0] + params_b[1][1]
    assert out_b.shape == (10, 40)
    assert jnp.allclose(out_b, ref_b, atol=1e-3, rtol=1e-3)

    # --- per-layer kernel tests (single-K and multi-K accumulator paths) ----
    kx1, kw1, kb1, kx2, kw2, kb2 = jax.random.split(k4, 6)
    xl = jax.random.normal(kx1, (10, 200), dtype=jnp.float32)
    wl = jax.random.normal(kw1, (200, 72), dtype=jnp.float32) * 0.05
    bl = jax.random.normal(kb1, (72,), dtype=jnp.float32)
    yl = jax.block_until_ready(linear_pallas(xl, wl, bl, activation=jnp.tanh))
    assert jnp.allclose(yl, jnp.tanh(xl @ wl + bl), atol=1e-3, rtol=1e-3)

    xk = jax.random.normal(kx2, (16, 2200), dtype=jnp.float32) * 0.05
    wk = jax.random.normal(kw2, (2200, 64), dtype=jnp.float32) * 0.05
    bk = jax.random.normal(kb2, (64,), dtype=jnp.float32)
    yk = jax.block_until_ready(linear_pallas(xk, wk, bk))
    assert jnp.allclose(yk, xk @ wk + bk, atol=1e-3, rtol=1e-3)

    print("KERNEL_OK")
</pallas_src>

<mosaic_0001>
module attributes {stable_mosaic.version = 11 : i64} {
  func.func @_mlp_fused_kernel(%arg0: i32, %arg1: memref<16x128xf32, #tpu.memory_space<vmem>>, %arg2: memref<128x128xf32, #tpu.memory_space<vmem>>, %arg3: memref<1x128xf32, #tpu.memory_space<vmem>>, %arg4: memref<128x128xf32, #tpu.memory_space<vmem>>, %arg5: memref<1x128xf32, #tpu.memory_space<vmem>>, %arg6: memref<128x128xf32, #tpu.memory_space<vmem>>, %arg7: memref<1x128xf32, #tpu.memory_space<vmem>>, %arg8: memref<16x128xf32, #tpu.memory_space<vmem>>) attributes {dimension_semantics = [#tpu.dimension_semantics<parallel>], iteration_bounds = array<i64: 1>, scalar_prefetch = 0 : i64, scratch_operands = 0 : i64, tpu.core_type = #tpu.core_type<tc>, window_params = [{transform_indices = @transform_0, window_bounds = array<i64: 16, 128>}, {pipeline_mode = #tpu.pipeline_mode<synchronous>, transform_indices = @transform_1, window_bounds = array<i64: 128, 128>}, {pipeline_mode = #tpu.pipeline_mode<synchronous>, transform_indices = @transform_2, window_bounds = array<i64: 1, 128>}, {pipeline_mode = #tpu.pipeline_mode<synchronous>, transform_indices = @transform_3, window_bounds = array<i64: 128, 128>}, {pipeline_mode = #tpu.pipeline_mode<synchronous>, transform_indices = @transform_4, window_bounds = array<i64: 1, 128>}, {pipeline_mode = #tpu.pipeline_mode<synchronous>, transform_indices = @transform_5, window_bounds = array<i64: 128, 128>}, {pipeline_mode = #tpu.pipeline_mode<synchronous>, transform_indices = @transform_6, window_bounds = array<i64: 1, 128>}, {transform_indices = @transform_7, window_bounds = array<i64: 16, 128>}]} {
    %c0 = arith.constant 0 : index
    %c0_0 = arith.constant 0 : index
    %0 = vector.load %arg1[%c0, %c0_0] : memref<16x128xf32, #tpu.memory_space<vmem>>, vector<16x128xf32>
    %c0_1 = arith.constant 0 : index
    %c0_2 = arith.constant 0 : index
    %1 = vector.load %arg2[%c0_1, %c0_2] : memref<128x128xf32, #tpu.memory_space<vmem>>, vector<128x128xf32>
    %cst = arith.constant dense<0.000000e+00> : vector<16x128xf32>
    %2 = tpu.matmul %0, %1, %cst {dimension_numbers = #tpu.dot_dimension_numbers<[1], [0], [0], [1], [0, 0, 1, 1], [], []>} : vector<16x128xf32>, vector<128x128xf32>, vector<16x128xf32> -> vector<16x128xf32>
    %c0_3 = arith.constant 0 : index
    %c0_4 = arith.constant 0 : index
    %3 = vector.load %arg3[%c0_3, %c0_4] : memref<1x128xf32, #tpu.memory_space<vmem>>, vector<1x128xf32>
    %4 = vector.broadcast %3 : vector<1x128xf32> to vector<16x128xf32>
    %5 = arith.addf %2, %4 : vector<16x128xf32>
    %6 = math.tanh %5 : vector<16x128xf32>
    %c0_5 = arith.constant 0 : index
    %c0_6 = arith.constant 0 : index
    %7 = vector.load %arg4[%c0_5, %c0_6] : memref<128x128xf32, #tpu.memory_space<vmem>>, vector<128x128xf32>
    %cst_7 = arith.constant dense<0.000000e+00> : vector<16x128xf32>
    %8 = tpu.matmul %6, %7, %cst_7 {dimension_numbers = #tpu.dot_dimension_numbers<[1], [0], [0], [1], [0, 0, 1, 1], [], []>} : vector<16x128xf32>, vector<128x128xf32>, vector<16x128xf32> -> vector<16x128xf32>
    %c0_8 = arith.constant 0 : index
    %c0_9 = arith.constant 0 : index
    %9 = vector.load %arg5[%c0_8, %c0_9] : memref<1x128xf32, #tpu.memory_space<vmem>>, vector<1x128xf32>
    %10 = vector.broadcast %9 : vector<1x128xf32> to vector<16x128xf32>
    %11 = arith.addf %8, %10 : vector<16x128xf32>
    %12 = math.tanh %11 : vector<16x128xf32>
    %c0_10 = arith.constant 0 : index
    %c0_11 = arith.constant 0 : index
    %13 = vector.load %arg6[%c0_10, %c0_11] : memref<128x128xf32, #tpu.memory_space<vmem>>, vector<128x128xf32>
    %cst_12 = arith.constant dense<0.000000e+00> : vector<16x128xf32>
    %14 = tpu.matmul %12, %13, %cst_12 {dimension_numbers = #tpu.dot_dimension_numbers<[1], [0], [0], [1], [0, 0, 1, 1], [], []>} : vector<16x128xf32>, vector<128x128xf32>, vector<16x128xf32> -> vector<16x128xf32>
    %c0_13 = arith.constant 0 : index
    %c0_14 = arith.constant 0 : index
    %15 = vector.load %arg7[%c0_13, %c0_14] : memref<1x128xf32, #tpu.memory_space<vmem>>, vector<1x128xf32>
    %16 = vector.broadcast %15 : vector<1x128xf32> to vector<16x128xf32>
    %17 = arith.addf %14, %16 : vector<16x128xf32>
    %c0_15 = arith.constant 0 : index
    %c0_16 = arith.constant 0 : index
    %18 = vector.load %arg8[%c0_15, %c0_16] : memref<16x128xf32, #tpu.memory_space<vmem>>, vector<16x128xf32>
    tpu.vector_store %arg8[%c0_15, %c0_16], %17 {strides = array<i32>} : memref<16x128xf32, #tpu.memory_space<vmem>>, vector<16x128xf32>,
    return
  }
  func.func @transform_0(%arg0: i32) -> (i32, i32) {
    %c0_i32 = arith.constant 0 : i32
    %c0_i32_0 = arith.constant 0 : i32
    return %arg0, %c0_i32 : i32, i32
  }
  func.func @transform_1(%arg0: i32) -> (i32, i32) {
    %c0_i32 = arith.constant 0 : i32
    %c0_i32_0 = arith.constant 0 : i32
    %c0_i32_1 = arith.constant 0 : i32
    return %c0_i32, %c0_i32_0 : i32, i32
  }
  func.func @transform_2(%arg0: i32) -> (i32, i32) {
    %c0_i32 = arith.constant 0 : i32
    %c0_i32_0 = arith.constant 0 : i32
    %c0_i32_1 = arith.constant 0 : i32
    return %c0_i32, %c0_i32_0 : i32, i32
  }
  func.func @transform_3(%arg0: i32) -> (i32, i32) {
    %c0_i32 = arith.constant 0 : i32
    %c0_i32_0 = arith.constant 0 : i32
    %c0_i32_1 = arith.constant 0 : i32
    return %c0_i32, %c0_i32_0 : i32, i32
  }
  func.func @transform_4(%arg0: i32) -> (i32, i32) {
    %c0_i32 = arith.constant 0 : i32
    %c0_i32_0 = arith.constant 0 : i32
    %c0_i32_1 = arith.constant 0 : i32
    return %c0_i32, %c0_i32_0 : i32, i32
  }
  func.func @transform_5(%arg0: i32) -> (i32, i32) {
    %c0_i32 = arith.constant 0 : i32
    %c0_i32_0 = arith.constant 0 : i32
    %c0_i32_1 = arith.constant 0 : i32
    return %c0_i32, %c0_i32_0 : i32, i32
  }
  func.func @transform_6(%arg0: i32) -> (i32, i32) {
    %c0_i32 = arith.constant 0 : i32
    %c0_i32_0 = arith.constant 0 : i32
    %c0_i32_1 = arith.constant 0 : i32
    return %c0_i32, %c0_i32_0 : i32, i32
  }
  func.func @transform_7(%arg0: i32) -> (i32, i32) {
    %c0_i32 = arith.constant 0 : i32
    %c0_i32_0 = arith.constant 0 : i32
    return %arg0, %c0_i32 : i32, i32
  }
}

</mosaic_0001>

<llo_original>
// kernel: tpu_custom_call.1
$region0: #{tpu_custom_call.1}
  #allocation0 [shape = 'u32[]', space=smem, size = 0x4, offset = 0x4, fixed_abs, tag = 'smem constant byte address 0x4 - core index']
  #allocation1 [shape = 'u32[72,128]{1,0:T(1,128)}', space=vmem, size = 0x9000, scoped, tag = 'internal scratch']
  %s0 = inlined_call_operand.hbm [shape: f32[16,128], index: 0, kind: input, shape index: {}]
  %s1 = inlined_call_operand.hbm [shape: f32[128,128], index: 1, kind: input, shape index: {}]
  %s2 = inlined_call_operand.vmem [shape: f32[1,128], index: 2, kind: input, shape index: {}]
  %s3 = inlined_call_operand.hbm [shape: f32[128,128], index: 3, kind: input, shape index: {}]
  %s4 = inlined_call_operand.vmem [shape: f32[1,128], index: 4, kind: input, shape index: {}]
  %s5 = inlined_call_operand.hbm [shape: f32[128,128], index: 5, kind: input, shape index: {}]
  %s6 = inlined_call_operand.vmem [shape: f32[1,128], index: 6, kind: input, shape index: {}]
  %s7 = inlined_call_operand.hbm [shape: f32[16,128], index: 7, kind: output, shape index: {}]
  %s8 = sld [smem:[#allocation0]]
  $region54: #{tpu_custom_call.1} parent=0
    _
  %s10 = ssub.s32 1, %s8
  %s11 = scalar_select 0, %s10, %s8
  $region1: #{tpu_custom_call.1} parent=0
    #allocation2 [shape = 'u8[8192]{0}', space=vmem, size = 0x2000, scoped, tag = 'input window, operand 0, single buffered']
    #allocation3 [shape = 's32[1]{0}', space=sflag, size = 0x4, scoped, tag = 'scoped memory for tpu_custom_call.1']
    #allocation4 [shape = 's32[1]{0}', space=sflag, size = 0x4, scoped, tag = 'scoped memory for tpu_custom_call.1']
    #allocation5 [shape = 'u8[65536]{0}', space=vmem, size = 0x10000, scoped, tag = 'input window, operand 1, single buffered']
    #allocation6 [shape = 's32[1]{0}', space=sflag, size = 0x4, scoped, tag = 'scoped memory for tpu_custom_call.1']
    #allocation7 [shape = 'u8[65536]{0}', space=vmem, size = 0x10000, scoped, tag = 'input window, operand 3, single buffered']
    #allocation8 [shape = 'u8[65536]{0}', space=vmem, size = 0x10000, scoped, tag = 'input window, operand 5, single buffered']
    #allocation9 [shape = 's32[1]{0}', space=sflag, size = 0x4, scoped, tag = 'scoped memory for tpu_custom_call.1']
    #allocation10 [shape = 'u8[8192]{0}', space=vmem, size = 0x2000, scoped, tag = 'output window, operand 0, single buffered']
    %12 = vsyncpa [#allocation3], 0
    %13 = vsyncpa [#allocation6], 0
    %14 = vsyncpa [#allocation9], 0
    %15 = vsyncpa [#allocation4], 0
    // Predicated region
    $region2: #{tpu_custom_call.1} parent=1 // pred_check
      _
    $region3: #{tpu_custom_call.1} parent=1 // pred_check_branch
      %17 = sbr.rel (0) target = $region5
    $region4: #{tpu_custom_call.1} parent=1 // pred_region
      %19 = vsyncadd [#allocation3], 0
      %s20 = sshll.u32 %s0, 4
      %s21 = int_to_ptr.hbm [resolvable:$true] %s20
      %s22 = sshll.u32 [#allocation2], 4
      %s23 = int_to_ptr.vmem [resolvable:$true] %s22
      %28 = dma.hbm_to_vmem [thread:$0]  %s21, 256, %s23, [#allocation3], 128, 128, 8
    $region5: #{tpu_custom_call.1} parent=1 // pred_fallthru
      _
    // Predicated region
    $region6: #{tpu_custom_call.1} parent=1 // pred_check
      _
    $region7: #{tpu_custom_call.1} parent=1 // pred_check_branch
      %30 = sbr.rel (0) target = $region9
    $region8: #{tpu_custom_call.1} parent=1 // pred_region
      %32 = vsyncadd [#allocation6], 0
      %s33 = sshll.u32 %s1, 4
      %s34 = int_to_ptr.hbm [resolvable:$true] %s33
      %s35 = sshll.u32 [#allocation5], 4
      %s36 = int_to_ptr.vmem [resolvable:$true] %s35
      %41 = dma.hbm_to_vmem [thread:$0]  %s34, 2048, %s36, [#allocation6], 128, 128, 8
    $region9: #{tpu_custom_call.1} parent=1 // pred_fallthru
      _
    // Predicated region
    $region10: #{tpu_custom_call.1} parent=1 // pred_check
      _
    $region11: #{tpu_custom_call.1} parent=1 // pred_check_branch
      %43 = sbr.rel (0) target = $region13
    $region12: #{tpu_custom_call.1} parent=1 // pred_region
      _
    $region13: #{tpu_custom_call.1} parent=1 // pred_fallthru
      _
    // Predicated region
    $region14: #{tpu_custom_call.1} parent=1 // pred_check
      _
    $region15: #{tpu_custom_call.1} parent=1 // pred_check_branch
      %45 = sbr.rel (0) target = $region17
    $region16: #{tpu_custom_call.1} parent=1 // pred_region
      %47 = vsyncadd [#allocation6], 0
      %s48 = sshll.u32 %s3, 4
      %s49 = int_to_ptr.hbm [resolvable:$true] %s48
      %s50 = sshll.u32 [#allocation7], 4
      %s51 = int_to_ptr.vmem [resolvable:$true] %s50
      %56 = dma.hbm_to_vmem [thread:$0]  %s49, 2048, %s51, [#allocation6], 128, 128, 8
    $region17: #{tpu_custom_call.1} parent=1 // pred_fallthru
      _
    // Predicated region
    $region18: #{tpu_custom_call.1} parent=1 // pred_check
      _
    $region19: #{tpu_custom_call.1} parent=1 // pred_check_branch
      %58 = sbr.rel (0) target = $region21
    $region20: #{tpu_custom_call.1} parent=1 // pred_region
      _
    $region21: #{tpu_custom_call.1} parent=1 // pred_fallthru
      _
    // Predicated region
    $region22: #{tpu_custom_call.1} parent=1 // pred_check
      _
    $region23: #{tpu_custom_call.1} parent=1 // pred_check_branch
      %60 = sbr.rel (0) target = $region25
    $region24: #{tpu_custom_call.1} parent=1 // pred_region
      %62 = vsyncadd [#allocation9], 0
      %s63 = sshll.u32 %s5, 4
      %s64 = int_to_ptr.hbm [resolvable:$true] %s63
      %s65 = sshll.u32 [#allocation8], 4
      %s66 = int_to_ptr.vmem [resolvable:$true] %s65
      %71 = dma.hbm_to_vmem [thread:$0]  %s64, 2048, %s66, [#allocation9], 128, 128, 8
    $region25: #{tpu_custom_call.1} parent=1 // pred_fallthru
      _
    // Predicated region
    $region26: #{tpu_custom_call.1} parent=1 // pred_check
      _
    $region27: #{tpu_custom_call.1} parent=1 // pred_check_branch
      %73 = sbr.rel (0) target = $region29
    $region28: #{tpu_custom_call.1} parent=1 // pred_region
      _
    $region29: #{tpu_custom_call.1} parent=1 // pred_fallthru
      _
    // Predicated region
    $region30: #{tpu_custom_call.1} parent=1 // pred_check
      _
    $region31: #{tpu_custom_call.1} parent=1 // pred_check_branch
      %75 = sbr.rel (0) target = $region33
    $region32: #{tpu_custom_call.1} parent=1 // pred_region
      %77 = dma.done [#allocation3], 256
    $region33: #{tpu_custom_call.1} parent=1 // pred_fallthru
      _
    // Predicated region
    $region34: #{tpu_custom_call.1} parent=1 // pred_check
      _
    $region35: #{tpu_custom_call.1} parent=1 // pred_check_branch
      %79 = sbr.rel (0) target = $region37
    $region36: #{tpu_custom_call.1} parent=1 // pred_region
      %81 = dma.done [#allocation6], 2048
    $region37: #{tpu_custom_call.1} parent=1 // pred_fallthru
      _
    // Predicated region
    $region38: #{tpu_custom_call.1} parent=1 // pred_check
      _
    $region39: #{tpu_custom_call.1} parent=1 // pred_check_branch
      %83 = sbr.rel (0) target = $region41
    $region40: #{tpu_custom_call.1} parent=1 // pred_region
      %85 = dma.done [#allocation6], 2048
    $region41: #{tpu_custom_call.1} parent=1 // pred_fallthru
      _
    // Predicated region
    $region42: #{tpu_custom_call.1} parent=1 // pred_check
      _
    $region43: #{tpu_custom_call.1} parent=1 // pred_check_branch
      %87 = sbr.rel (0) target = $region45
    $region44: #{tpu_custom_call.1} parent=1 // pred_region
      %89 = dma.done [#allocation9], 2048
    $region45: #{tpu_custom_call.1} parent=1 // pred_fallthru
      _
    %v90 = vld [vmem:[#allocation2] sm:$0xff]
    %v91 = vld [vmem:[#allocation2 + $0x8] sm:$0xff]
    %v92 = vld [vmem:[#allocation5] sm:$0xff]
    %v93 = vld [vmem:[#allocation5 + $0x8] sm:$0xff]
    %v94 = vld [vmem:[#allocation5 + $0x10] sm:$0xff]
    %v95 = vld [vmem:[#allocation5 + $0x18] sm:$0xff]
    %v96 = vld [vmem:[#allocation5 + $0x20] sm:$0xff]
    %v97 = vld [vmem:[#allocation5 + $0x28] sm:$0xff]
    %v98 = vld [vmem:[#allocation5 + $0x30] sm:$0xff]
    %v99 = vld [vmem:[#allocation5 + $0x38] sm:$0xff]
    %v100 = vld [vmem:[#allocation5 + $0x40] sm:$0xff]
    %v101 = vld [vmem:[#allocation5 + $0x48] sm:$0xff]
    %v102 = vld [vmem:[#allocation5 + $0x50] sm:$0xff]
    %v103 = vld [vmem:[#allocation5 + $0x58] sm:$0xff]
    %v104 = vld [vmem:[#allocation5 + $0x60] sm:$0xff]
    %v105 = vld [vmem:[#allocation5 + $0x68] sm:$0xff]
    %v106 = vld [vmem:[#allocation5 + $0x70] sm:$0xff]
    %v107 = vld [vmem:[#allocation5 + $0x78] sm:$0xff]
    %v108 = vld [vmem:[%s2] sm:$0x1]
    %v110 = vperm.slane %v108, 0
    %112 = vmatpush.msra.mxu0 %v107
    %113 = vmatpush.msra.mxu0 %v106
    %114 = vmatpush.msra.mxu0 %v105
    %115 = vmatpush.msra.mxu0 %v104
    %116 = vmatpush.msra.mxu0 %v103
    %117 = vmatpush.msra.mxu0 %v102
    %118 = vmatpush.msra.mxu0 %v101
    %119 = vmatpush.msra.mxu0 %v100
    %120 = vmatpush.msra.mxu0 %v99
    %121 = vmatpush.msra.mxu0 %v98
    %122 = vmatpush.msra.mxu0 %v97
    %123 = vmatpush.msra.mxu0 %v96
    %124 = vmatpush.msra.mxu0 %v95
    %125 = vmatpush.msra.mxu0 %v94
    %126 = vmatpush.msra.mxu0 %v93
    %127 = vmatpush.msra.mxu0 %v92
    %128 = vmatmul.f32.gmra.mxu0 %v90
    %v129 = vpop.f32.mrf.mxu0
    %v130 = vadd.f32 %v110, %v129
    %131 = vmatmul.f32.gmra.mxu0 %v91
    %v132 = vpop.f32.mrf.mxu0
    %v133 = vadd.f32 %v110, %v132
    %134 = vdwg.mxu0
    %v135 = vtanh.pop %v130
    %v136 = vtanh.pop %v133
    %v137 = vld [vmem:[#allocation7] sm:$0xff]
    %v138 = vld [vmem:[#allocation7 + $0x8] sm:$0xff]
    %v139 = vld [vmem:[#allocation7 + $0x10] sm:$0xff]
    %v140 = vld [vmem:[#allocation7 + $0x18] sm:$0xff]
    %v141 = vld [vmem:[#allocation7 + $0x20] sm:$0xff]
    %v142 = vld [vmem:[#allocation7 + $0x28] sm:$0xff]
    %v143 = vld [vmem:[#allocation7 + $0x30] sm:$0xff]
    %v144 = vld [vmem:[#allocation7 + $0x38] sm:$0xff]
    %v145 = vld [vmem:[#allocation7 + $0x40] sm:$0xff]
    %v146 = vld [vmem:[#allocation7 + $0x48] sm:$0xff]
    %v147 = vld [vmem:[#allocation7 + $0x50] sm:$0xff]
    %v148 = vld [vmem:[#allocation7 + $0x58] sm:$0xff]
    %v149 = vld [vmem:[#allocation7 + $0x60] sm:$0xff]
    %v150 = vld [vmem:[#allocation7 + $0x68] sm:$0xff]
    %v151 = vld [vmem:[#allocation7 + $0x70] sm:$0xff]
    %v152 = vld [vmem:[#allocation7 + $0x78] sm:$0xff]
    %v153 = vld [vmem:[%s4] sm:$0x1]
    %v155 = vperm.slane %v153, 0
    %157 = vmatpush.msra.mxu0 %v152
    %158 = vmatpush.msra.mxu0 %v151
    %159 = vmatpush.msra.mxu0 %v150
    %160 = vmatpush.msra.mxu0 %v149
    %161 = vmatpush.msra.mxu0 %v148
    %162 = vmatpush.msra.mxu0 %v147
    %163 = vmatpush.msra.mxu0 %v146
    %164 = vmatpush.msra.mxu0 %v145
    %165 = vmatpush.msra.mxu0 %v144
    %166 = vmatpush.msra.mxu0 %v143
    %167 = vmatpush.msra.mxu0 %v142
    %168 = vmatpush.msra.mxu0 %v141
    %169 = vmatpush.msra.mxu0 %v140
    %170 = vmatpush.msra.mxu0 %v139
    %171 = vmatpush.msra.mxu0 %v138
    %172 = vmatpush.msra.mxu0 %v137
    %173 = vmatmul.f32.gmra.mxu0 %v135
    %v174 = vpop.f32.mrf.mxu0
    %v175 = vadd.f32 %v155, %v174
    %176 = vmatmul.f32.gmra.mxu0 %v136
    %v177 = vpop.f32.mrf.mxu0
    %v178 = vadd.f32 %v155, %v177
    %179 = vdwg.mxu0
    %v180 = vtanh.pop %v175
    %v181 = vtanh.pop %v178
    %v182 = vld [vmem:[#allocation8] sm:$0xff]
    %v183 = vld [vmem:[#allocation8 + $0x8] sm:$0xff]
    %v184 = vld [vmem:[#allocation8 + $0x10] sm:$0xff]
    %v185 = vld [vmem:[#allocation8 + $0x18] sm:$0xff]
    %v186 = vld [vmem:[#allocation8 + $0x20] sm:$0xff]
    %v187 = vld [vmem:[#allocation8 + $0x28] sm:$0xff]
    %v188 = vld [vmem:[#allocation8 + $0x30] sm:$0xff]
    %v189 = vld [vmem:[#allocation8 + $0x38] sm:$0xff]
    %v190 = vld [vmem:[#allocation8 + $0x40] sm:$0xff]
    %v191 = vld [vmem:[#allocation8 + $0x48] sm:$0xff]
    %v192 = vld [vmem:[#allocation8 + $0x50] sm:$0xff]
    %v193 = vld [vmem:[#allocation8 + $0x58] sm:$0xff]
    %v194 = vld [vmem:[#allocation8 + $0x60] sm:$0xff]
    %v195 = vld [vmem:[#allocation8 + $0x68] sm:$0xff]
    %v196 = vld [vmem:[#allocation8 + $0x70] sm:$0xff]
    %v197 = vld [vmem:[#allocation8 + $0x78] sm:$0xff]
    %v198 = vld [vmem:[%s6] sm:$0x1]
    %v200 = vperm.slane %v198, 0
    %202 = vmatpush.msra.mxu0 %v197
    %203 = vmatpush.msra.mxu0 %v196
    %204 = vmatpush.msra.mxu0 %v195
    %205 = vmatpush.msra.mxu0 %v194
    %206 = vmatpush.msra.mxu0 %v193
    %207 = vmatpush.msra.mxu0 %v192
    %208 = vmatpush.msra.mxu0 %v191
    %209 = vmatpush.msra.mxu0 %v190
    %210 = vmatpush.msra.mxu0 %v189
    %211 = vmatpush.msra.mxu0 %v188
    %212 = vmatpush.msra.mxu0 %v187
    %213 = vmatpush.msra.mxu0 %v186
    %214 = vmatpush.msra.mxu0 %v185
    %215 = vmatpush.msra.mxu0 %v184
    %216 = vmatpush.msra.mxu0 %v183
    %217 = vmatpush.msra.mxu0 %v182
    %218 = vmatmul.f32.gmra.mxu0 %v180
    %v219 = vpop.f32.mrf.mxu0
    %v220 = vadd.f32 %v200, %v219
    %221 = vmatmul.f32.gmra.mxu0 %v181
    %v222 = vpop.f32.mrf.mxu0
    %v223 = vadd.f32 %v200, %v222
    %224 = vdwg.mxu0
    %225 = vst [vmem:[#allocation10] sm:$0xff] %v220
    %226 = vst [vmem:[#allocation10 + $0x8] sm:$0xff] %v223
    // Predicated region
    $region46: #{tpu_custom_call.1} parent=1 // pred_check
      _
    $region47: #{tpu_custom_call.1} parent=1 // pred_check_branch
      %228 = sbr.rel (0) target = $region49
    $region48: #{tpu_custom_call.1} parent=1 // pred_region
      %230 = vsyncadd [#allocation4], 0
      %s231 = sshll.u32 [#allocation10], 4
      %s232 = int_to_ptr.vmem [resolvable:$true] %s231
      %s233 = sshll.u32 %s7, 4
      %s234 = int_to_ptr.hbm [resolvable:$true] %s233
      %239 = dma.vmem_to_hbm [thread:$0]  %s232, 256, %s234, [#allocation4], 128, 128, 8
    $region49: #{tpu_custom_call.1} parent=1 // pred_fallthru
      _
    // Predicated region
    $region50: #{tpu_custom_call.1} parent=1 // pred_check
      _
    $region51: #{tpu_custom_call.1} parent=1 // pred_check_branch
      %241 = sbr.rel (0) target = $region53
    $region52: #{tpu_custom_call.1} parent=1 // pred_region
      %243 = dma.done [#allocation4], 256
    $region53: #{tpu_custom_call.1} parent=1 // pred_fallthru
      _
    %244 = vsyncpa [#allocation3], 1
    %245 = vsyncpa [#allocation6], 1
    %246 = vsyncpa [#allocation9], 1
    %247 = vsyncpa [#allocation4], 1

</llo_original>
